<compile_context>
chip_gen: v7x
topology: tpu7x:2x2x1
jax: 0.10.0
libtpu: 0.0.40
codegen_flags: <defaults>
</compile_context>

<pallas_src>
import jax
import jax.numpy as jnp
from jax import lax
from jax.experimental import pallas as pl
from jax.experimental.pallas import tpu as pltpu

HIDDEN = 768          # nn.Linear(768, 2) input dim
NUM_CLASSES = 2       # nn.Linear(768, 2) output dim
NPAD = 128            # classifier output padded to one full lane width

_CHUNK_TEMP_BYTES = 4 * 1024 * 1024   # bound on the per-chunk f32 upcast temporary


# --------------------------------------------------------------------------- #
# Host-side helpers (tiling / padding / params)
# --------------------------------------------------------------------------- #
def _vmem_budget():
    """Generation-aware (vmem_limit_bytes, per-input-block byte budget)."""
    try:
        info = pltpu.get_tpu_info()
        cap = int(getattr(info, "vmem_capacity_bytes", 64 * 1024 * 1024))
    except Exception:
        cap = 64 * 1024 * 1024        # conservative (v7x per-TC VMEM)
    vmem_limit = min(96 * 1024 * 1024, int(cap * 0.72))
    block_budget = vmem_limit // 3    # 2x double-buffered input + temps + w/b/acc/out
    return vmem_limit, block_budget


def _batch_tile(B):
    """Batch tile TB and padded batch B_pad (multiple of TB).

    For B >= 16, TB is a multiple of 8 that is <= B/2, so the 'parallel' batch
    axis always has >= 2 tiles (both v7x TensorCores get work)."""
    if B < 16:
        return B, B
    cap = min(128, max(8, (B // 2) // 8 * 8))
    t = cap
    while t >= 8:                     # prefer an exact divisor (no padding)
        if B % t == 0:
            return t, B
        t -= 8
    return cap, -(-B // cap) * cap


def _seq_tile(S, cap, align):
    """Sequence tile TS (multiple of `align` when tiling) and padded S_pad."""
    if S <= cap:
        return S, S                   # single full block (full-dim exemption)
    cap_al = max(align, (cap // align) * align)
    t = cap_al
    while t >= align:                 # prefer an exact divisor (no padding)
        if S % t == 0:
            return t, S
        t -= align
    t = cap_al                        # no divisor: keep the budget, pad S
    return t, -(-S // t) * t


def prepare_cls_params(cls_w, cls_b, seq_len):
    """Build padded classifier params once (hoisted out of the per-call path).

    The 1/seq_len mean scale is folded into the weight, so the kernel only has
    to accumulate sums over the sequence axis.  NOTE: w_pad is only valid for
    this `seq_len`; rebuild whenever the (original, un-padded) S changes.
    """
    w_pad = jnp.zeros((HIDDEN, NPAD), jnp.float32)
    w_pad = w_pad.at[:, :NUM_CLASSES].set(cls_w.astype(jnp.float32) / float(seq_len))
    b_pad = jnp.zeros((1, NPAD), jnp.float32)
    b_pad = b_pad.at[:, :NUM_CLASSES].set(cls_b.astype(jnp.float32))
    return w_pad, b_pad


# --------------------------------------------------------------------------- #
# Kernels
# --------------------------------------------------------------------------- #
def _acc_seq_sum(h_ref, acc_ref):
    """acc_ref += sum(h_ref, axis=1) accumulated in f32, processed in sequence
    chunks so the bf16->f32 upcast temporary stays ~<= 4 MiB (no block-sized
    f32 copy, no spill pressure on the single store slot)."""
    tb, ts, h = h_ref.shape
    chunk = max(32, (_CHUNK_TEMP_BYTES // (tb * h * 4)) // 32 * 32)
    if ts <= chunk:
        acc_ref[...] += jnp.sum(h_ref[...], axis=1, dtype=jnp.float32)
        return
    nfull, rem = divmod(ts, chunk)

    def body(s, carry):
        off = pl.multiple_of(s * chunk, chunk)
        acc_ref[...] += jnp.sum(h_ref[:, pl.ds(off, chunk), :],
                                axis=1, dtype=jnp.float32)
        return carry

    lax.fori_loop(0, nfull, body, 0, unroll=True)
    if rem > 0:
        acc_ref[...] += jnp.sum(h_ref[:, pl.ds(nfull * chunk, rem), :],
                                axis=1, dtype=jnp.float32)


def _scorer_kernel(h_ref, w_ref, b_ref, o_ref, acc_ref):
    """grid = (batch tiles [parallel], sequence tiles [arbitrary]).
    h_ref: [TB, TS, H]  w_ref: [H, NPAD] (1/S folded in)  b_ref: [1, NPAD]
    o_ref: [TB, NPAD]   acc_ref: [TB, H] f32 scratch."""
    k = pl.program_id(1)

    @pl.when(k == 0)
    def _init():
        acc_ref[...] = jnp.zeros_like(acc_ref)

    _acc_seq_sum(h_ref, acc_ref)

    @pl.when(k == pl.num_programs(1) - 1)
    def _finalize():
        logits = jnp.dot(acc_ref[...], w_ref[...],
                         preferred_element_type=jnp.float32)
        o_ref[...] = logits + b_ref[...]


def _scorer_split_kernel(h_ref, w_ref, o_ref, acc_ref):
    """Small-batch path: grid = (2 core-halves [parallel], seq tiles per half).
    Emits per-half partial logits [1, B, NPAD]; bias + combine done by caller."""
    k = pl.program_id(1)

    @pl.when(k == 0)
    def _init():
        acc_ref[...] = jnp.zeros_like(acc_ref)

    _acc_seq_sum(h_ref, acc_ref)

    @pl.when(k == pl.num_programs(1) - 1)
    def _finalize():
        o_ref[...] = jnp.dot(acc_ref[...], w_ref[...],
                             preferred_element_type=jnp.float32)[None]


# --------------------------------------------------------------------------- #
# Wrapper
# --------------------------------------------------------------------------- #
def scorer_forward(hidden_states, w_pad, b_pad, *, block_byte_budget=None):
    """hidden_states: [B, S, HIDDEN] (f32 or bf16); w_pad/b_pad from
    prepare_cls_params(cls_w, cls_b, S) with the SAME (un-padded) S.
    Returns logits [B, NUM_CLASSES] == Scorer's post-backbone compute."""
    B, S, H = hidden_states.shape
    assert H == HIDDEN
    itemsize = jnp.dtype(hidden_states.dtype).itemsize
    align = max(8, 32 // itemsize)            # dtype-aware sublane alignment

    vmem_limit, default_budget = _vmem_budget()
    budget = block_byte_budget or default_budget

    TB, B_pad = _batch_tile(B)
    ts_cap = max(align, budget // (TB * H * itemsize))
    TS, S_pad = _seq_tile(S, ts_cap, align)
    seq_tiles = S_pad // TS

    # Small batch that cannot be split across cores: split the sequence
    # reduction across a leading size-2 parallel axis instead.
    use_split = (B < 16) and (seq_tiles >= 2)
    if use_split and seq_tiles % 2 != 0:
        seq_tiles += 1
        S_pad = seq_tiles * TS

    h = hidden_states
    if B_pad != B or S_pad != S:
        # Zero rows don't change the sequence sum; 1/S (original) is already
        # folded into w_pad, so padding is exactly mean-preserving.
        h = jnp.pad(h, ((0, B_pad - B), (0, S_pad - S), (0, 0)))

    cost = pl.CostEstimate(
        flops=B_pad * S_pad * H + 2 * B_pad * H * NPAD,
        transcendentals=0,
        bytes_accessed=B_pad * S_pad * H * itemsize + (H + 1 + B_pad) * NPAD * 4,
    )
    cparams = pltpu.CompilerParams(
        dimension_semantics=("parallel", "arbitrary"),
        vmem_limit_bytes=vmem_limit,
    )
    # Loop-invariant classifier weight/bias: single-buffered.
    w_spec = pl.BlockSpec((H, NPAD), lambda i, k: (0, 0),
                          pipeline_mode=pl.Buffered(1))

    if use_split:
        tiles_per_core = seq_tiles // 2
        partial = pl.pallas_call(
            _scorer_split_kernel,
            out_shape=jax.ShapeDtypeStruct((2, B_pad, NPAD), jnp.float32),
            grid=(2, tiles_per_core),
            in_specs=[
                pl.BlockSpec((B_pad, TS, H),
                             lambda c, k: (0, c * tiles_per_core + k, 0)),
                w_spec,
            ],
            out_specs=pl.BlockSpec((1, B_pad, NPAD), lambda c, k: (c, 0, 0)),
            scratch_shapes=[pltpu.VMEM((B_pad, H), jnp.float32)],
            compiler_params=cparams,
            cost_estimate=cost,
        )(h, w_pad)
        logits = partial[0] + partial[1] + b_pad   # tiny combine epilogue
        return logits[:B, :NUM_CLASSES]

    b_spec = pl.BlockSpec((1, NPAD), lambda i, k: (0, 0),
                          pipeline_mode=pl.Buffered(1))
    out = pl.pallas_call(
        _scorer_kernel,
        out_shape=jax.ShapeDtypeStruct((B_pad, NPAD), jnp.float32),
        grid=(B_pad // TB, seq_tiles),
        in_specs=[
            pl.BlockSpec((TB, TS, H), lambda i, k: (i, k, 0)),
            w_spec,
            b_spec,
        ],
        out_specs=pl.BlockSpec((TB, NPAD), lambda i, k: (i, 0)),
        scratch_shapes=[pltpu.VMEM((TB, H), jnp.float32)],
        compiler_params=cparams,
        cost_estimate=cost,
    )(h, w_pad, b_pad)
    return out[:B, :NUM_CLASSES]


# --------------------------------------------------------------------------- #
# Self-test
# --------------------------------------------------------------------------- #
if __name__ == "__main__":
    key = jax.random.PRNGKey(0)
    k_h, k_w, k_b, k_h2, k_h3 = jax.random.split(key, 5)

    # Deterministic synthetic nn.Linear(768, 2) parameters (not a checkpoint).
    cls_w = jax.random.normal(k_w, (HIDDEN, NUM_CLASSES), dtype=jnp.float32) * 0.02
    cls_b = jax.random.normal(k_b, (NUM_CLASSES,), dtype=jnp.float32) * 0.02

    # --- 1) Small-shape case matching the module (batch=2, seq=8, hidden=768, f32) ---
    B, S = 2, 8
    h1 = jax.random.normal(k_h, (B, S, HIDDEN), dtype=jnp.float32)
    w_pad, b_pad = prepare_cls_params(cls_w, cls_b, S)
    logits1 = scorer_forward(h1, w_pad, b_pad)
    jax.block_until_ready(logits1)
    ref1 = jnp.mean(h1, axis=1) @ cls_w + cls_b
    assert logits1.shape == (B, NUM_CLASSES)
    assert jnp.allclose(logits1, ref1, atol=1e-4, rtol=1e-4)

    # --- 2) Batch-tiled path: bf16, B=20 (pads to 24, TB=8 -> 3 parallel tiles) ---
    B2, S2 = 20, 1024
    h2 = jax.random.normal(k_h2, (B2, S2, HIDDEN), dtype=jnp.bfloat16)
    w_pad2, b_pad2 = prepare_cls_params(cls_w, cls_b, S2)
    logits2 = scorer_forward(h2, w_pad2, b_pad2)
    jax.block_until_ready(logits2)
    ref2 = jnp.mean(h2.astype(jnp.float32), axis=1) @ cls_w + cls_b
    assert logits2.shape == (B2, NUM_CLASSES)
    assert jnp.allclose(logits2, ref2, atol=5e-3, rtol=5e-2)

    # --- 3) Small-batch split path: bf16, B=2, S=1000 with a tiny block budget
    #        (forces multiple sequence tiles + sequence padding + 2-way core split) ---
    B3, S3 = 2, 1000
    h3 = jax.random.normal(k_h3, (B3, S3, HIDDEN), dtype=jnp.bfloat16)
    w_pad3, b_pad3 = prepare_cls_params(cls_w, cls_b, S3)
    logits3 = scorer_forward(h3, w_pad3, b_pad3, block_byte_budget=512 * 1024)
    jax.block_until_ready(logits3)
    ref3 = jnp.mean(h3.astype(jnp.float32), axis=1) @ cls_w + cls_b
    assert logits3.shape == (B3, NUM_CLASSES)
    assert jnp.allclose(logits3, ref3, atol=5e-3, rtol=5e-2)

    # TODO(synk): the tokenizer + transformer backbone (self.model) are external
    # modules and are not reproduced; the kernel covers the mean-pool + cls head.
    print("KERNEL_OK")
</pallas_src>

<mosaic_0001>
module attributes {stable_mosaic.version = 11 : i64} {
  func.func @_scorer_kernel(%arg0: i32, %arg1: i32, %arg2: memref<2x8x768xf32, #tpu.memory_space<vmem>>, %arg3: memref<768x128xf32, #tpu.memory_space<vmem>>, %arg4: memref<1x128xf32, #tpu.memory_space<vmem>>, %arg5: memref<2x128xf32, #tpu.memory_space<vmem>>, %arg6: memref<2x768xf32, #tpu.memory_space<vmem>>) attributes {dimension_semantics = [#tpu.dimension_semantics<parallel>, #tpu.dimension_semantics<arbitrary>], iteration_bounds = array<i64: 1, 1>, scalar_prefetch = 0 : i64, scratch_operands = 1 : i64, tpu.core_type = #tpu.core_type<tc>, window_params = [{transform_indices = @transform_0, window_bounds = array<i64: 2, 8, 768>}, {pipeline_mode = #tpu.pipeline_mode<synchronous>, transform_indices = @transform_1, window_bounds = array<i64: 768, 128>}, {pipeline_mode = #tpu.pipeline_mode<synchronous>, transform_indices = @transform_2, window_bounds = array<i64: 1, 128>}, {transform_indices = @transform_3, window_bounds = array<i64: 2, 128>}]} {
    %c0_i32 = arith.constant 0 : i32
    %0 = arith.cmpi eq, %arg1, %c0_i32 : i32
    %1 = arith.extui %0 : i1 to i32
    %c0_i32_0 = arith.constant 0 : i32
    %2 = arith.cmpi ne, %1, %c0_i32_0 : i32
    scf.if %2 {
      %cst_9 = arith.constant 0.000000e+00 : f32
      %11 = vector.broadcast %cst_9 : f32 to vector<2x768xf32>
      %c0_10 = arith.constant 0 : index
      %c0_11 = arith.constant 0 : index
      %12 = vector.load %arg6[%c0_10, %c0_11] : memref<2x768xf32, #tpu.memory_space<vmem>>, vector<2x768xf32>
      tpu.vector_store %arg6[%c0_10, %c0_11], %11 {strides = array<i32>} : memref<2x768xf32, #tpu.memory_space<vmem>>, vector<2x768xf32>,
    } else {
    }
    %c0 = arith.constant 0 : index
    %c0_1 = arith.constant 0 : index
    %3 = vector.load %arg6[%c0, %c0_1] : memref<2x768xf32, #tpu.memory_space<vmem>>, vector<2x768xf32>
    %c0_2 = arith.constant 0 : index
    %c0_3 = arith.constant 0 : index
    %c0_4 = arith.constant 0 : index
    %4 = vector.load %arg2[%c0_2, %c0_3, %c0_4] : memref<2x8x768xf32, #tpu.memory_space<vmem>>, vector<2x8x768xf32>
    %cst = arith.constant dense<0.000000e+00> : vector<2x768xf32>
    %5 = vector.multi_reduction <add>, %4, %cst [1] : vector<2x8x768xf32> to vector<2x768xf32>
    %6 = arith.addf %3, %5 : vector<2x768xf32>
    %c0_5 = arith.constant 0 : index
    %c0_6 = arith.constant 0 : index
    %7 = vector.load %arg6[%c0_5, %c0_6] : memref<2x768xf32, #tpu.memory_space<vmem>>, vector<2x768xf32>
    tpu.vector_store %arg6[%c0_5, %c0_6], %6 {strides = array<i32>} : memref<2x768xf32, #tpu.memory_space<vmem>>, vector<2x768xf32>,
    %c0_i32_7 = arith.constant 0 : i32
    %8 = arith.cmpi eq, %arg1, %c0_i32_7 : i32
    %9 = arith.extui %8 : i1 to i32
    %c0_i32_8 = arith.constant 0 : i32
    %10 = arith.cmpi ne, %9, %c0_i32_8 : i32
    scf.if %10 {
      %c0_9 = arith.constant 0 : index
      %c0_10 = arith.constant 0 : index
      %11 = vector.load %arg6[%c0_9, %c0_10] : memref<2x768xf32, #tpu.memory_space<vmem>>, vector<2x768xf32>
      %c0_11 = arith.constant 0 : index
      %c0_12 = arith.constant 0 : index
      %12 = vector.load %arg3[%c0_11, %c0_12] : memref<768x128xf32, #tpu.memory_space<vmem>>, vector<768x128xf32>
      %cst_13 = arith.constant dense<0.000000e+00> : vector<2x128xf32>
      %13 = tpu.matmul %11, %12, %cst_13 {dimension_numbers = #tpu.dot_dimension_numbers<[1], [0], [0], [1], [0, 0, 1, 1], [], []>} : vector<2x768xf32>, vector<768x128xf32>, vector<2x128xf32> -> vector<2x128xf32>
      %c0_14 = arith.constant 0 : index
      %c0_15 = arith.constant 0 : index
      %14 = vector.load %arg4[%c0_14, %c0_15] : memref<1x128xf32, #tpu.memory_space<vmem>>, vector<1x128xf32>
      %15 = vector.broadcast %14 : vector<1x128xf32> to vector<2x128xf32>
      %16 = arith.addf %13, %15 : vector<2x128xf32>
      %c0_16 = arith.constant 0 : index
      %c0_17 = arith.constant 0 : index
      %17 = vector.load %arg5[%c0_16, %c0_17] : memref<2x128xf32, #tpu.memory_space<vmem>>, vector<2x128xf32>
      tpu.vector_store %arg5[%c0_16, %c0_17], %16 {strides = array<i32>} : memref<2x128xf32, #tpu.memory_space<vmem>>, vector<2x128xf32>,
    } else {
    }
    return
  }
  func.func @transform_0(%arg0: i32, %arg1: i32) -> (i32, i32, i32) {
    %c0_i32 = arith.constant 0 : i32
    %c0_i32_0 = arith.constant 0 : i32
    return %arg0, %arg1, %c0_i32 : i32, i32, i32
  }
  func.func @transform_1(%arg0: i32, %arg1: i32) -> (i32, i32) {
    %c0_i32 = arith.constant 0 : i32
    %c0_i32_0 = arith.constant 0 : i32
    %c0_i32_1 = arith.constant 0 : i32
    return %c0_i32, %c0_i32_0 : i32, i32
  }
  func.func @transform_2(%arg0: i32, %arg1: i32) -> (i32, i32) {
    %c0_i32 = arith.constant 0 : i32
    %c0_i32_0 = arith.constant 0 : i32
    %c0_i32_1 = arith.constant 0 : i32
    return %c0_i32, %c0_i32_0 : i32, i32
  }
  func.func @transform_3(%arg0: i32, %arg1: i32) -> (i32, i32) {
    %c0_i32 = arith.constant 0 : i32
    %c0_i32_0 = arith.constant 0 : i32
    return %arg0, %c0_i32 : i32, i32
  }
}

</mosaic_0001>

<llo_original>
// kernel: tpu_custom_call.1
$region0: #{tpu_custom_call.1}
  #allocation0 [shape = 'u32[]', space=smem, size = 0x4, offset = 0x4, fixed_abs, tag = 'smem constant byte address 0x4 - core index']
  #allocation1 [shape = 'u32[144,128]{1,0:T(1,128)}', space=vmem, size = 0x12000, scoped, tag = 'internal scratch']
  #allocation2 [shape = 'f32[2,768]{1,0:T(2,128)}', space=vmem, size = 0x1800, scoped, tag = 'scratch operand']
  %s0 = inlined_call_operand.hbm [shape: f32[2,8,768], index: 0, kind: input, shape index: {}]
  %s1 = inlined_call_operand.hbm [shape: f32[768,128], index: 1, kind: input, shape index: {}]
  %s2 = inlined_call_operand.vmem [shape: f32[1,128], index: 2, kind: input, shape index: {}]
  %s3 = inlined_call_operand.hbm [shape: f32[2,128], index: 3, kind: output, shape index: {}]
  %s4 = sld [smem:[#allocation0]]
  $region38: #{tpu_custom_call.1} parent=0
    _
  %s6 = ssub.s32 1, %s4
  %s7 = scalar_select 0, %s6, %s4
  $region1: #{tpu_custom_call.1} parent=0
    #allocation3 [shape = 'u8[49152]{0}', space=vmem, size = 0xc000, scoped, tag = 'input window, operand 0, single buffered']
    #allocation4 [shape = 's32[1]{0}', space=sflag, size = 0x4, scoped, tag = 'scoped memory for tpu_custom_call.1']
    #allocation5 [shape = 's32[1]{0}', space=sflag, size = 0x4, scoped, tag = 'scoped memory for tpu_custom_call.1']
    #allocation6 [shape = 'u8[393216]{0}', space=vmem, size = 0x60000, scoped, tag = 'input window, operand 1, single buffered']
    #allocation7 [shape = 's32[1]{0}', space=sflag, size = 0x4, scoped, tag = 'scoped memory for tpu_custom_call.1']
    #allocation8 [shape = 'u8[1024]{0}', space=vmem, size = 0x400, scoped, tag = 'output window, operand 0, single buffered']
    %8 = vsyncpa [#allocation4], 0
    %9 = vsyncpa [#allocation7], 0
    %10 = vsyncpa [#allocation5], 0
    // Predicated region
    $region2: #{tpu_custom_call.1} parent=1 // pred_check
      _
    $region3: #{tpu_custom_call.1} parent=1 // pred_check_branch
      %12 = sbr.rel (0) target = $region5
    $region4: #{tpu_custom_call.1} parent=1 // pred_region
      %s14 = ssub.s32 1536, 1536
      %15 = vsyncadd [#allocation4], %s14
      %s16 = sshll.u32 [#allocation3], 4
      %s17 = int_to_ptr.vmem [resolvable:$true] %s16
      %22 = dma.hbm_to_vmem [thread:$0]  %s0, 1536, %s17, [#allocation4], 768, 768, 48
    $region5: #{tpu_custom_call.1} parent=1 // pred_fallthru
      _
    // Predicated region
    $region6: #{tpu_custom_call.1} parent=1 // pred_check
      _
    $region7: #{tpu_custom_call.1} parent=1 // pred_check_branch
      %24 = sbr.rel (0) target = $region9
    $region8: #{tpu_custom_call.1} parent=1 // pred_region
      %s26 = ssub.s32 12288, 12288
      %27 = vsyncadd [#allocation7], %s26
      %s28 = sshll.u32 [#allocation6], 4
      %s29 = int_to_ptr.vmem [resolvable:$true] %s28
      %34 = dma.hbm_to_vmem [thread:$0]  %s1, 12288, %s29, [#allocation7], 128, 128, 8
    $region9: #{tpu_custom_call.1} parent=1 // pred_fallthru
      _
    // Predicated region
    $region10: #{tpu_custom_call.1} parent=1 // pred_check
      _
    $region11: #{tpu_custom_call.1} parent=1 // pred_check_branch
      %36 = sbr.rel (0) target = $region13
    $region12: #{tpu_custom_call.1} parent=1 // pred_region
      _
    $region13: #{tpu_custom_call.1} parent=1 // pred_fallthru
      _
    // Predicated region
    $region14: #{tpu_custom_call.1} parent=1 // pred_check
      _
    $region15: #{tpu_custom_call.1} parent=1 // pred_check_branch
      %38 = sbr.rel (0) target = $region17
    $region16: #{tpu_custom_call.1} parent=1 // pred_region
      %39 = dma.done [#allocation4], 1536
    $region17: #{tpu_custom_call.1} parent=1 // pred_fallthru
      _
    // Predicated region
    $region18: #{tpu_custom_call.1} parent=1 // pred_check
      _
    $region19: #{tpu_custom_call.1} parent=1 // pred_check_branch
      %41 = sbr.rel (0) target = $region21
    $region20: #{tpu_custom_call.1} parent=1 // pred_region
      %42 = dma.done [#allocation7], 12288
    $region21: #{tpu_custom_call.1} parent=1 // pred_fallthru
      _
    %p43 = scmp.eq.s32.totalorder 0, 0
    // Predicated region
    $region22: #{tpu_custom_call.1} parent=1 // pred_check
      %p44 = pneg %p43
    $region23: #{tpu_custom_call.1} parent=1 // pred_check_branch
      %46 = sbr.rel (%p44) target = $region25
    $region24: #{tpu_custom_call.1} parent=1 // pred_region
      %47 = vst [vmem:[#allocation2] sm:$0xff] 0.0
      %48 = vst [vmem:[#allocation2 + $0x8] sm:$0xf] 0.0
    $region25: #{tpu_custom_call.1} parent=1 // pred_fallthru
      _
    %v49 = vld [vmem:[#allocation2] sm:$0xff]
    %v50 = vld [vmem:[#allocation2 + $0x8] sm:$0xf]
    %v51 = vld [vmem:[#allocation3] sm:$0xff]
    %v52 = vld [vmem:[#allocation3 + $0x8] sm:$0xff]
    %v53 = vld [vmem:[#allocation3 + $0x10] sm:$0xff]
    %v54 = vld [vmem:[#allocation3 + $0x18] sm:$0xff]
    %v55 = vld [vmem:[#allocation3 + $0x20] sm:$0xff]
    %v56 = vld [vmem:[#allocation3 + $0x28] sm:$0xff]
    %v57 = vld [vmem:[#allocation3 + $0x30] sm:$0xff]
    %v58 = vld [vmem:[#allocation3 + $0x38] sm:$0xff]
    %v59 = vld [vmem:[#allocation3 + $0x40] sm:$0xff]
    %v60 = vld [vmem:[#allocation3 + $0x48] sm:$0xff]
    %v61 = vld [vmem:[#allocation3 + $0x50] sm:$0xff]
    %v62 = vld [vmem:[#allocation3 + $0x58] sm:$0xff]
    %v63 = vrot.slane %v51, 4
    %v64 = vadd.f32 %v51, %v63
    %v65 = vrot.slane %v64, 2
    %v66 = vadd.f32 %v64, %v65
    %v67 = vrot.slane %v66, 1
    %v68 = vadd.f32 %v66, %v67
    %v69 = vrot.slane %v52, 4
    %v70 = vadd.f32 %v52, %v69
    %v71 = vrot.slane %v70, 2
    %v72 = vadd.f32 %v70, %v71
    %v73 = vrot.slane %v72, 1
    %v74 = vadd.f32 %v72, %v73
    %v75 = vrot.slane %v53, 4
    %v76 = vadd.f32 %v53, %v75
    %v77 = vrot.slane %v76, 2
    %v78 = vadd.f32 %v76, %v77
    %v79 = vrot.slane %v78, 1
    %v80 = vadd.f32 %v78, %v79
    %v81 = vrot.slane %v54, 4
    %v82 = vadd.f32 %v54, %v81
    %v83 = vrot.slane %v82, 2
    %v84 = vadd.f32 %v82, %v83
    %v85 = vrot.slane %v84, 1
    %v86 = vadd.f32 %v84, %v85
    %v87 = vrot.slane %v55, 4
    %v88 = vadd.f32 %v55, %v87
    %v89 = vrot.slane %v88, 2
    %v90 = vadd.f32 %v88, %v89
    %v91 = vrot.slane %v90, 1
    %v92 = vadd.f32 %v90, %v91
    %v93 = vrot.slane %v56, 4
    %v94 = vadd.f32 %v56, %v93
    %v95 = vrot.slane %v94, 2
    %v96 = vadd.f32 %v94, %v95
    %v97 = vrot.slane %v96, 1
    %v98 = vadd.f32 %v96, %v97
    %v99 = vrot.slane %v57, 4
    %v100 = vadd.f32 %v57, %v99
    %v101 = vrot.slane %v100, 2
    %v102 = vadd.f32 %v100, %v101
    %v103 = vrot.slane %v102, 1
    %v104 = vadd.f32 %v102, %v103
    %v105 = vrot.slane %v58, 4
    %v106 = vadd.f32 %v58, %v105
    %v107 = vrot.slane %v106, 2
    %v108 = vadd.f32 %v106, %v107
    %v109 = vrot.slane %v108, 1
    %v110 = vadd.f32 %v108, %v109
    %v111 = vrot.slane %v59, 4
    %v112 = vadd.f32 %v59, %v111
    %v113 = vrot.slane %v112, 2
    %v114 = vadd.f32 %v112, %v113
    %v115 = vrot.slane %v114, 1
    %v116 = vadd.f32 %v114, %v115
    %v117 = vrot.slane %v60, 4
    %v118 = vadd.f32 %v60, %v117
    %v119 = vrot.slane %v118, 2
    %v120 = vadd.f32 %v118, %v119
    %v121 = vrot.slane %v120, 1
    %v122 = vadd.f32 %v120, %v121
    %v123 = vrot.slane %v61, 4
    %v124 = vadd.f32 %v61, %v123
    %v125 = vrot.slane %v124, 2
    %v126 = vadd.f32 %v124, %v125
    %v127 = vrot.slane %v126, 1
    %v128 = vadd.f32 %v126, %v127
    %v129 = vrot.slane %v62, 4
    %v130 = vadd.f32 %v62, %v129
    %v131 = vrot.slane %v130, 2
    %v132 = vadd.f32 %v130, %v131
    %v133 = vrot.slane %v132, 1
    %v134 = vadd.f32 %v132, %v133
    %v147 = vcombine.low %v68, %v74
    %v148 = vcombine.low %v80, %v86
    %v150 = vunpack.c.l.s4 1983009808
    %v151 = vunpack.c.0.s8 %v150
    %v152 = vlaneseq
    %v153 = vshrl.u32 %v152, 7
    %v154 = vsub.s32 %v151, %v153
    %v155 = vrot.slane %v147, %v154
    %v157 = vunpack.c.l.s4 1983009808
    %v158 = vunpack.c.0.s8 %v157
    %v159 = vlaneseq
    %v160 = vshrl.u32 %v159, 7
    %v161 = vsub.s32 %v158, %v160
    %v162 = vrot.slane %v148, %v161
    %v163 = vcombine.low %v155, %v162
    %v164 = vcombine.low %v92, %v98
    %v166 = vunpack.c.l.s4 1983009808
    %v167 = vunpack.c.0.s8 %v166
    %v168 = vlaneseq
    %v169 = vshrl.u32 %v168, 7
    %v170 = vsub.s32 %v167, %v169
    %v171 = vrot.slane %v164, %v170
    %v172 = vcombine.low %v104, %v110
    %v173 = vcombine.low %v116, %v122
    %v175 = vunpack.c.l.s4 1983009808
    %v176 = vunpack.c.0.s8 %v175
    %v177 = vlaneseq
    %v178 = vshrl.u32 %v177, 7
    %v179 = vsub.s32 %v176, %v178
    %v180 = vrot.slane %v172, %v179
    %v182 = vunpack.c.l.s4 1983009808
    %v183 = vunpack.c.0.s8 %v182
    %v184 = vlaneseq
    %v185 = vshrl.u32 %v184, 7
    %v186 = vsub.s32 %v183, %v185
    %v187 = vrot.slane %v173, %v186
    %v188 = vcombine.low %v180, %v187
    %v189 = vcombine.low %v128, %v134
    %v191 = vunpack.c.l.s4 1983009808
    %v192 = vunpack.c.0.s8 %v191
    %v193 = vlaneseq
    %v194 = vshrl.u32 %v193, 7
    %v195 = vsub.s32 %v192, %v194
    %v196 = vrot.slane %v189, %v195
    %vm197 = vcmask 1044484
    %v198 = vsel %vm197, %v163, %v163
    %vm199 = vcmask 1046534
    %v200 = vsel %vm199, %v163, %v198
    %v201 = vrot.slane %v188, 7
    %vm202 = vcmask 1041409
    %v203 = vsel %vm202, %v201, %v200
    %vm204 = vcmask 1043459
    %v205 = vsel %vm204, %v201, %v203
    %vm206 = vcmask 1045509
    %v207 = vsel %vm206, %v201, %v205
    %vm208 = vcmask 1047559
    %v209 = vsel %vm208, %v201, %v207
    %v210 = vsel %vm197, %v171, %v171
    %v211 = vsel %vm199, %v171, %v210
    %v212 = vrot.slane %v196, 7
    %v213 = vsel %vm202, %v212, %v211
    %v214 = vsel %vm204, %v212, %v213
    %v215 = vsel %vm206, %v212, %v214
    %v216 = vsel %vm208, %v212, %v215
    %v219 = vadd.f32 %v49, %v209
    %v220 = vadd.f32 %v50, %v216
    %221 = vst [vmem:[#allocation2] sm:$0xff] %v219
    %222 = vst [vmem:[#allocation2 + $0x8] sm:$0xf] %v220
    // Predicated region
    $region26: #{tpu_custom_call.1} parent=1 // pred_check
      %p223 = pneg %p43
    $region27: #{tpu_custom_call.1} parent=1 // pred_check_branch
      %225 = sbr.rel (%p223) target = $region29
    $region28: #{tpu_custom_call.1} parent=1 // pred_region
      %v226 = vld [vmem:[#allocation2] sm:$0xff]
      %v227 = vld [vmem:[#allocation2 + $0x8] sm:$0xf]
      %v228 = vld [vmem:[#allocation6] sm:$0xff]
      %v229 = vld [vmem:[#allocation6 + $0x8] sm:$0xff]
      %v230 = vld [vmem:[#allocation6 + $0x10] sm:$0xff]
      %v231 = vld [vmem:[#allocation6 + $0x18] sm:$0xff]
      %v232 = vld [vmem:[#allocation6 + $0x20] sm:$0xff]
      %v233 = vld [vmem:[#allocation6 + $0x28] sm:$0xff]
      %v234 = vld [vmem:[#allocation6 + $0x30] sm:$0xff]
      %v235 = vld [vmem:[#allocation6 + $0x38] sm:$0xff]
      %v236 = vld [vmem:[#allocation6 + $0x40] sm:$0xff]
      %v237 = vld [vmem:[#allocation6 + $0x48] sm:$0xff]
      %v238 = vld [vmem:[#allocation6 + $0x50] sm:$0xff]
      %v239 = vld [vmem:[#allocation6 + $0x58] sm:$0xff]
      %v240 = vld [vmem:[#allocation6 + $0x60] sm:$0xff]
      %v241 = vld [vmem:[#allocation6 + $0x68] sm:$0xff]
      %v242 = vld [vmem:[#allocation6 + $0x70] sm:$0xff]
      %v243 = vld [vmem:[#allocation6 + $0x78] sm:$0xff]
      %v244 = vld [vmem:[#allocation6 + $0x80] sm:$0xff]
      %v245 = vld [vmem:[#allocation6 + $0x88] sm:$0xff]
      %v246 = vld [vmem:[#allocation6 + $0x90] sm:$0xff]
      %v247 = vld [vmem:[#allocation6 + $0x98] sm:$0xff]
      %v248 = vld [vmem:[#allocation6 + $0xa0] sm:$0xff]
      %v249 = vld [vmem:[#allocation6 + $0xa8] sm:$0xff]
      %v250 = vld [vmem:[#allocation6 + $0xb0] sm:$0xff]
      %v251 = vld [vmem:[#allocation6 + $0xb8] sm:$0xff]
      %v252 = vld [vmem:[#allocation6 + $0xc0] sm:$0xff]
      %v253 = vld [vmem:[#allocation6 + $0xc8] sm:$0xff]
      %v254 = vld [vmem:[#allocation6 + $0xd0] sm:$0xff]
      %v255 = vld [vmem:[#allocation6 + $0xd8] sm:$0xff]
      %v256 = vld [vmem:[#allocation6 + $0xe0] sm:$0xff]
      %v257 = vld [vmem:[#allocation6 + $0xe8] sm:$0xff]
      %v258 = vld [vmem:[#allocation6 + $0xf0] sm:$0xff]
      %v259 = vld [vmem:[#allocation6 + $0xf8] sm:$0xff]
      %v260 = vld [vmem:[#allocation6 + $0x100] sm:$0xff]
      %v261 = vld [vmem:[#allocation6 + $0x108] sm:$0xff]
      %v262 = vld [vmem:[#allocation6 + $0x110] sm:$0xff]
      %v263 = vld [vmem:[#allocation6 + $0x118] sm:$0xff]
      %v264 = vld [vmem:[#allocation6 + $0x120] sm:$0xff]
      %v265 = vld [vmem:[#allocation6 + $0x128] sm:$0xff]
      %v266 = vld [vmem:[#allocation6 + $0x130] sm:$0xff]
      %v267 = vld [vmem:[#allocation6 + $0x138] sm:$0xff]
      %v268 = vld [vmem:[#allocation6 + $0x140] sm:$0xff]
      %v269 = vld [vmem:[#allocation6 + $0x148] sm:$0xff]
      %v270 = vld [vmem:[#allocation6 + $0x150] sm:$0xff]
      %v271 = vld [vmem:[#allocation6 + $0x158] sm:$0xff]
      %v272 = vld [vmem:[#allocation6 + $0x160] sm:$0xff]
      %v273 = vld [vmem:[#allocation6 + $0x168] sm:$0xff]
      %v274 = vld [vmem:[#allocation6 + $0x170] sm:$0xff]
      %v275 = vld [vmem:[#allocation6 + $0x178] sm:$0xff]
      %v276 = vld [vmem:[#allocation6 + $0x180] sm:$0xff]
      %v277 = vld [vmem:[#allocation6 + $0x188] sm:$0xff]
      %v278 = vld [vmem:[#allocation6 + $0x190] sm:$0xff]
      %v279 = vld [vmem:[#allocation6 + $0x198] sm:$0xff]
      %v280 = vld [vmem:[#allocation6 + $0x1a0] sm:$0xff]
      %v281 = vld [vmem:[#allocation6 + $0x1a8] sm:$0xff]
      %v282 = vld [vmem:[#allocation6 + $0x1b0] sm:$0xff]
      %v283 = vld [vmem:[#allocation6 + $0x1b8] sm:$0xff]
      %v284 = vld [vmem:[#allocation6 + $0x1c0] sm:$0xff]
      %v285 = vld [vmem:[#allocation6 + $0x1c8] sm:$0xff]
      %v286 = vld [vmem:[#allocation6 + $0x1d0] sm:$0xff]
      %v287 = vld [vmem:[#allocation6 + $0x1d8] sm:$0xff]
      %v288 = vld [vmem:[#allocation6 + $0x1e0] sm:$0xff]
      %v289 = vld [vmem:[#allocation6 + $0x1e8] sm:$0xff]
      %v290 = vld [vmem:[#allocation6 + $0x1f0] sm:$0xff]
      %v291 = vld [vmem:[#allocation6 + $0x1f8] sm:$0xff]
      %v292 = vld [vmem:[#allocation6 + $0x200] sm:$0xff]
      %v293 = vld [vmem:[#allocation6 + $0x208] sm:$0xff]
      %v294 = vld [vmem:[#allocation6 + $0x210] sm:$0xff]
      %v295 = vld [vmem:[#allocation6 + $0x218] sm:$0xff]
      %v296 = vld [vmem:[#allocation6 + $0x220] sm:$0xff]
      %v297 = vld [vmem:[#allocation6 + $0x228] sm:$0xff]
      %v298 = vld [vmem:[#allocation6 + $0x230] sm:$0xff]
      %v299 = vld [vmem:[#allocation6 + $0x238] sm:$0xff]
      %v300 = vld [vmem:[#allocation6 + $0x240] sm:$0xff]
      %v301 = vld [vmem:[#allocation6 + $0x248] sm:$0xff]
      %v302 = vld [vmem:[#allocation6 + $0x250] sm:$0xff]
      %v303 = vld [vmem:[#allocation6 + $0x258] sm:$0xff]
      %v304 = vld [vmem:[#allocation6 + $0x260] sm:$0xff]
      %v305 = vld [vmem:[#allocation6 + $0x268] sm:$0xff]
      %v306 = vld [vmem:[#allocation6 + $0x270] sm:$0xff]
      %v307 = vld [vmem:[#allocation6 + $0x278] sm:$0xff]
      %v308 = vld [vmem:[#allocation6 + $0x280] sm:$0xff]
      %v309 = vld [vmem:[#allocation6 + $0x288] sm:$0xff]
      %v310 = vld [vmem:[#allocation6 + $0x290] sm:$0xff]
      %v311 = vld [vmem:[#allocation6 + $0x298] sm:$0xff]
      %v312 = vld [vmem:[#allocation6 + $0x2a0] sm:$0xff]
      %v313 = vld [vmem:[#allocation6 + $0x2a8] sm:$0xff]
      %v314 = vld [vmem:[#allocation6 + $0x2b0] sm:$0xff]
      %v315 = vld [vmem:[#allocation6 + $0x2b8] sm:$0xff]
      %v316 = vld [vmem:[#allocation6 + $0x2c0] sm:$0xff]
      %v317 = vld [vmem:[#allocation6 + $0x2c8] sm:$0xff]
      %v318 = vld [vmem:[#allocation6 + $0x2d0] sm:$0xff]
      %v319 = vld [vmem:[#allocation6 + $0x2d8] sm:$0xff]
      %v320 = vld [vmem:[#allocation6 + $0x2e0] sm:$0xff]
      %v321 = vld [vmem:[#allocation6 + $0x2e8] sm:$0xff]
      %v322 = vld [vmem:[#allocation6 + $0x2f0] sm:$0xff]
      %v323 = vld [vmem:[#allocation6 + $0x2f8] sm:$0xff]
      %v324 = vld [vmem:[%s2] sm:$0x1]
      %v326 = vlaneseq
      %v327 = vshrl.u32 %v326, 7
      %v328 = vsub.s32 0, %v327
      %v329 = vrot.slane %v324, %v328
      %v333 = vcombine.high %v226, %v226
      %v335 = vunpack.c.l.s4 1983009808
      %v336 = vunpack.c.0.s8 %v335
      %v337 = vlaneseq
      %v338 = vshrl.u32 %v337, 7
      %v339 = vsub.s32 %v336, %v338
      %v340 = vrot.slane %v226, %v339
      %v342 = vunpack.c.l.s4 1983009808
      %v343 = vunpack.c.0.s8 %v342
      %v344 = vlaneseq
      %v345 = vshrl.u32 %v344, 7
      %v346 = vsub.s32 %v343, %v345
      %v347 = vrot.slane %v333, %v346
      %v348 = vcombine.high %v340, %v340
      %v349 = vcombine.high %v347, %v347
      %v351 = vunpack.c.l.s4 1983009808
      %v352 = vunpack.c.0.s8 %v351
      %v353 = vlaneseq
      %v354 = vshrl.u32 %v353, 7
      %v355 = vsub.s32 %v352, %v354
      %v356 = vrot.slane %v227, %v355
      %v357 = vcombine.high %v356, %v356
      %364 = vmatprep.subr.mxu0 0.0
      %365 = vmatpush1.msra.mxu0 %v228
      %366 = vmatprep.subr.mxu0 0.0
      %367 = vmatpush1.msra.mxu0 %v229
      %368 = vmatprep.subr.mxu0 0.0
      %369 = vmatpush1.msra.mxu0 %v230
      %370 = vmatprep.subr.mxu0 0.0
      %371 = vmatpush1.msra.mxu0 %v231
      %372 = vmatprep.subr.mxu0 0.0
      %373 = vmatpush1.msra.mxu0 %v232
      %374 = vmatprep.subr.mxu0 0.0
      %375 = vmatpush1.msra.mxu0 %v233
      %376 = vmatprep.subr.mxu0 0.0
      %377 = vmatpush1.msra.mxu0 %v234
      %378 = vmatprep.subr.mxu0 0.0
      %379 = vmatpush1.msra.mxu0 %v235
      %380 = vmatprep.subr.mxu0 0.0
      %381 = vmatpush1.msra.mxu0 %v236
      %382 = vmatprep.subr.mxu0 0.0
      %383 = vmatpush1.msra.mxu0 %v237
      %384 = vmatprep.subr.mxu0 0.0
      %385 = vmatpush1.msra.mxu0 %v238
      %386 = vmatprep.subr.mxu0 0.0
      %387 = vmatpush1.msra.mxu0 %v239
      %388 = vmatprep.subr.mxu0 0.0
      %389 = vmatpush1.msra.mxu0 %v240
      %390 = vmatprep.subr.mxu0 0.0
      %391 = vmatpush1.msra.mxu0 %v241
      %392 = vmatprep.subr.mxu0 0.0
      %393 = vmatpush1.msra.mxu0 %v242
      %394 = vmatprep.subr.mxu0 0.0
      %395 = vmatpush1.msra.mxu0 %v243
      %396 = vmatprep.subr.mxu0 0.0
      %397 = vmatpush1.msra.mxu0 %v244
      %398 = vmatprep.subr.mxu0 0.0
      %399 = vmatpush1.msra.mxu0 %v245
      %400 = vmatprep.subr.mxu0 0.0
      %401 = vmatpush1.msra.mxu0 %v246
      %402 = vmatprep.subr.mxu0 0.0
      %403 = vmatpush1.msra.mxu0 %v247
      %404 = vmatprep.subr.mxu0 0.0
      %405 = vmatpush1.msra.mxu0 %v248
      %406 = vmatprep.subr.mxu0 0.0
      %407 = vmatpush1.msra.mxu0 %v249
      %408 = vmatprep.subr.mxu0 0.0
      %409 = vmatpush1.msra.mxu0 %v250
      %410 = vmatprep.subr.mxu0 0.0
      %411 = vmatpush1.msra.mxu0 %v251
      %412 = vmatprep.subr.mxu0 0.0
      %413 = vmatpush1.msra.mxu0 %v252
      %414 = vmatprep.subr.mxu0 0.0
      %415 = vmatpush1.msra.mxu0 %v253
      %416 = vmatprep.subr.mxu0 0.0
      %417 = vmatpush1.msra.mxu0 %v254
      %418 = vmatprep.subr.mxu0 0.0
      %419 = vmatpush1.msra.mxu0 %v255
      %420 = vmatprep.subr.mxu0 0.0
      %421 = vmatpush1.msra.mxu0 %v256
      %422 = vmatprep.subr.mxu0 0.0
      %423 = vmatpush1.msra.mxu0 %v257
      %424 = vmatprep.subr.mxu0 0.0
      %425 = vmatpush1.msra.mxu0 %v258
      %426 = vmatprep.subr.mxu0 0.0
      %427 = vmatpush1.msra.mxu0 %v259
      %428 = vmatprep.mubr.f32.mxu0 %v348
      %429 = vmatmul.mubr.f32.gmra.mrb[0].mxu0 %v340
      %v430 = vpop.f32.mrb[0].mxu0
      %v431 = vadd.f32 %v329, %v430
      %v432 = vpop.f32.mrb[0].mxu0
      %433 = vdwg.mxu0
      %434 = vmatprep.subr.mxu0 0.0
      %435 = vmatpush1.msra.mxu0 %v260
      %436 = vmatprep.subr.mxu0 0.0
      %437 = vmatpush1.msra.mxu0 %v261
      %438 = vmatprep.subr.mxu0 0.0
      %439 = vmatpush1.msra.mxu0 %v262
      %440 = vmatprep.subr.mxu0 0.0
      %441 = vmatpush1.msra.mxu0 %v263
      %442 = vmatprep.subr.mxu0 0.0
      %443 = vmatpush1.msra.mxu0 %v264
      %444 = vmatprep.subr.mxu0 0.0
      %445 = vmatpush1.msra.mxu0 %v265
      %446 = vmatprep.subr.mxu0 0.0
      %447 = vmatpush1.msra.mxu0 %v266
      %448 = vmatprep.subr.mxu0 0.0
      %449 = vmatpush1.msra.mxu0 %v267
      %450 = vmatprep.subr.mxu0 0.0
      %451 = vmatpush1.msra.mxu0 %v268
      %452 = vmatprep.subr.mxu0 0.0
      %453 = vmatpush1.msra.mxu0 %v269
      %454 = vmatprep.subr.mxu0 0.0
      %455 = vmatpush1.msra.mxu0 %v270
      %456 = vmatprep.subr.mxu0 0.0
      %457 = vmatpush1.msra.mxu0 %v271
      %458 = vmatprep.subr.mxu0 0.0
      %459 = vmatpush1.msra.mxu0 %v272
      %460 = vmatprep.subr.mxu0 0.0
      %461 = vmatpush1.msra.mxu0 %v273
      %462 = vmatprep.subr.mxu0 0.0
      %463 = vmatpush1.msra.mxu0 %v274
      %464 = vmatprep.subr.mxu0 0.0
      %465 = vmatpush1.msra.mxu0 %v275
      %466 = vmatprep.subr.mxu0 0.0
      %467 = vmatpush1.msra.mxu0 %v276
      %468 = vmatprep.subr.mxu0 0.0
      %469 = vmatpush1.msra.mxu0 %v277
      %470 = vmatprep.subr.mxu0 0.0
      %471 = vmatpush1.msra.mxu0 %v278
      %472 = vmatprep.subr.mxu0 0.0
      %473 = vmatpush1.msra.mxu0 %v279
      %474 = vmatprep.subr.mxu0 0.0
      %475 = vmatpush1.msra.mxu0 %v280
      %476 = vmatprep.subr.mxu0 0.0
      %477 = vmatpush1.msra.mxu0 %v281
      %478 = vmatprep.subr.mxu0 0.0
      %479 = vmatpush1.msra.mxu0 %v282
      %480 = vmatprep.subr.mxu0 0.0
      %481 = vmatpush1.msra.mxu0 %v283
      %482 = vmatprep.subr.mxu0 0.0
      %483 = vmatpush1.msra.mxu0 %v284
      %484 = vmatprep.subr.mxu0 0.0
      %485 = vmatpush1.msra.mxu0 %v285
      %486 = vmatprep.subr.mxu0 0.0
      %487 = vmatpush1.msra.mxu0 %v286
      %488 = vmatprep.subr.mxu0 0.0
      %489 = vmatpush1.msra.mxu0 %v287
      %490 = vmatprep.subr.mxu0 0.0
      %491 = vmatpush1.msra.mxu0 %v288
      %492 = vmatprep.subr.mxu0 0.0
      %493 = vmatpush1.msra.mxu0 %v289
      %494 = vmatprep.subr.mxu0 0.0
      %495 = vmatpush1.msra.mxu0 %v290
      %496 = vmatprep.subr.mxu0 0.0
      %497 = vmatpush1.msra.mxu0 %v291
      %498 = vmatprep.mubr.f32.mxu0 %v349
      %499 = vmatmul.mubr.f32.gmra.mrb[0].mxu0 %v347
      %v500 = vpop.f32.mrb[0].mxu0
      %v501 = vadd.f32 %v431, %v500
      %v502 = vpop.f32.mrb[0].mxu0
      %503 = vdwg.mxu0
      %504 = vmatprep.subr.mxu0 0.0
      %505 = vmatpush1.msra.mxu0 %v292
      %506 = vmatprep.subr.mxu0 0.0
      %507 = vmatpush1.msra.mxu0 %v293
      %508 = vmatprep.subr.mxu0 0.0
      %509 = vmatpush1.msra.mxu0 %v294
      %510 = vmatprep.subr.mxu0 0.0
      %511 = vmatpush1.msra.mxu0 %v295
      %512 = vmatprep.subr.mxu0 0.0
      %513 = vmatpush1.msra.mxu0 %v296
      %514 = vmatprep.subr.mxu0 0.0
      %515 = vmatpush1.msra.mxu0 %v297
      %516 = vmatprep.subr.mxu0 0.0
      %517 = vmatpush1.msra.mxu0 %v298
      %518 = vmatprep.subr.mxu0 0.0
      %519 = vmatpush1.msra.mxu0 %v299
      %520 = vmatprep.subr.mxu0 0.0
      %521 = vmatpush1.msra.mxu0 %v300
      %522 = vmatprep.subr.mxu0 0.0
      %523 = vmatpush1.msra.mxu0 %v301
      %524 = vmatprep.subr.mxu0 0.0
      %525 = vmatpush1.msra.mxu0 %v302
      %526 = vmatprep.subr.mxu0 0.0
      %527 = vmatpush1.msra.mxu0 %v303
      %528 = vmatprep.subr.mxu0 0.0
      %529 = vmatpush1.msra.mxu0 %v304
      %530 = vmatprep.subr.mxu0 0.0
      %531 = vmatpush1.msra.mxu0 %v305
      %532 = vmatprep.subr.mxu0 0.0
      %533 = vmatpush1.msra.mxu0 %v306
      %534 = vmatprep.subr.mxu0 0.0
      %535 = vmatpush1.msra.mxu0 %v307
      %536 = vmatprep.subr.mxu0 0.0
      %537 = vmatpush1.msra.mxu0 %v308
      %538 = vmatprep.subr.mxu0 0.0
      %539 = vmatpush1.msra.mxu0 %v309
      %540 = vmatprep.subr.mxu0 0.0
      %541 = vmatpush1.msra.mxu0 %v310
      %542 = vmatprep.subr.mxu0 0.0
      %543 = vmatpush1.msra.mxu0 %v311
      %544 = vmatprep.subr.mxu0 0.0
      %545 = vmatpush1.msra.mxu0 %v312
      %546 = vmatprep.subr.mxu0 0.0
      %547 = vmatpush1.msra.mxu0 %v313
      %548 = vmatprep.subr.mxu0 0.0
      %549 = vmatpush1.msra.mxu0 %v314
      %550 = vmatprep.subr.mxu0 0.0
      %551 = vmatpush1.msra.mxu0 %v315
      %552 = vmatprep.subr.mxu0 0.0
      %553 = vmatpush1.msra.mxu0 %v316
      %554 = vmatprep.subr.mxu0 0.0
      %555 = vmatpush1.msra.mxu0 %v317
      %556 = vmatprep.subr.mxu0 0.0
      %557 = vmatpush1.msra.mxu0 %v318
      %558 = vmatprep.subr.mxu0 0.0
      %559 = vmatpush1.msra.mxu0 %v319
      %560 = vmatprep.subr.mxu0 0.0
      %561 = vmatpush1.msra.mxu0 %v320
      %562 = vmatprep.subr.mxu0 0.0
      %563 = vmatpush1.msra.mxu0 %v321
      %564 = vmatprep.subr.mxu0 0.0
      %565 = vmatpush1.msra.mxu0 %v322
      %566 = vmatprep.subr.mxu0 0.0
      %567 = vmatpush1.msra.mxu0 %v323
      %568 = vmatprep.mubr.f32.mxu0 %v357
      %569 = vmatmul.mubr.f32.gmra.mrb[0].mxu0 %v356
      %v570 = vpop.f32.mrb[0].mxu0
      %v571 = vadd.f32 %v501, %v570
      %v572 = vpop.f32.mrb[0].mxu0
      %573 = vdwg.mxu0
      %574 = vst [vmem:[#allocation8] sm:$0x3] %v571
    $region29: #{tpu_custom_call.1} parent=1 // pred_fallthru
      _
    // Predicated region
    $region30: #{tpu_custom_call.1} parent=1 // pred_check
      _
    $region31: #{tpu_custom_call.1} parent=1 // pred_check_branch
      %576 = sbr.rel (0) target = $region33
    $region32: #{tpu_custom_call.1} parent=1 // pred_region
      %s578 = ssub.s32 32, 32
      %579 = vsyncadd [#allocation5], %s578
      %s581 = sshll.u32 [#allocation8], 4
      %s582 = int_to_ptr.vmem [resolvable:$true] %s581
      %584 = dma.vmem_to_hbm [thread:$0]  %s582, 32, %s3, [#allocation5]
    $region33: #{tpu_custom_call.1} parent=1 // pred_fallthru
      _
    // Predicated region
    $region34: #{tpu_custom_call.1} parent=1 // pred_check
      _
    $region35: #{tpu_custom_call.1} parent=1 // pred_check_branch
      %586 = sbr.rel (0) target = $region37
    $region36: #{tpu_custom_call.1} parent=1 // pred_region
      %587 = dma.done [#allocation5], 32
    $region37: #{tpu_custom_call.1} parent=1 // pred_fallthru
      _
    %588 = vsyncpa [#allocation4], 1
    %589 = vsyncpa [#allocation7], 1
    %590 = vsyncpa [#allocation5], 1

</llo_original>
